<compile_context>
chip_gen: v7x
topology: tpu7x:2x2x1
jax: 0.10.0
libtpu: 0.0.40
codegen_flags: <defaults>
</compile_context>

<pallas_src>
import functools
import math

import numpy as np
import jax
import jax.numpy as jnp
from jax.experimental import pallas as pl
from jax.experimental.pallas import tpu as pltpu

_COMPUTE_DTYPE = jnp.bfloat16   # MXU operand dtype (accumulation stays f32)


# --------------------------------------------------------------------------- #
# Pallas kernel: one lane-dense matmul per grid step.
# --------------------------------------------------------------------------- #
def _interp_matmul_kernel(x_ref, w_ref, o_ref):
    # x_ref: (TB, H*W)   w_ref: (H*W, TN)   o_ref: (TB, TN)
    o_ref[...] = jnp.dot(
        x_ref[...], w_ref[...], preferred_element_type=jnp.float32
    ).astype(o_ref.dtype)


# --------------------------------------------------------------------------- #
# Interpolation-matrix construction (PyTorch F.interpolate semantics).
# --------------------------------------------------------------------------- #
def _axis_interp_matrix(n_in, n_out, mode, align_corners):
    """1-D interpolation matrix A with shape (n_out, n_in): out = A @ in."""
    m = np.zeros((n_out, n_in), dtype=np.float32)
    rows = np.arange(n_out)
    if mode == "nearest":
        # PyTorch 'nearest': src = floor(dst * n_in / n_out); align_corners ignored.
        src = np.clip(np.floor(rows * (n_in / n_out)).astype(np.int64), 0, n_in - 1)
        m[rows, src] = 1.0
        return m
    if mode in ("bilinear", "linear"):
        if n_out == 1:
            src = np.zeros((1,), dtype=np.float64)
            if not align_corners:
                src[:] = np.clip(0.5 * n_in - 0.5, 0.0, n_in - 1)
        elif align_corners:
            src = rows * ((n_in - 1) / (n_out - 1))
        else:
            src = np.clip((rows + 0.5) * (n_in / n_out) - 0.5, 0.0, n_in - 1)
        lo = np.clip(np.floor(src).astype(np.int64), 0, n_in - 1)
        hi = np.minimum(lo + 1, n_in - 1)
        frac = (src - lo).astype(np.float32)
        m[rows, lo] += 1.0 - frac
        m[rows, hi] += frac
        return m
    raise NotImplementedError(f"mode={mode!r} is not supported")


def _output_hw(H, W, size, scale_factor):
    if size is not None:
        if isinstance(size, (tuple, list)):
            return int(size[0]), int(size[1])
        return int(size), int(size)
    if scale_factor is None:
        raise ValueError("Interpolate: either `size` or `scale_factor` must be set")
    if isinstance(scale_factor, (tuple, list)):
        sh, sw = scale_factor
    else:
        sh = sw = scale_factor
    return int(math.floor(H * sh)), int(math.floor(W * sw))


def _pick_row_tile(n_rows):
    # second-minor block dim: multiple of 8 that divides n_rows, else full dim.
    for t in (256, 128, 64, 32, 16, 8):
        if n_rows % t == 0:
            return t
    return n_rows


def _pick_col_tile(n_cols):
    # lane block dim: multiple of 128 that divides n_cols, preferring >=2 grid
    # steps so both v7x TensorCores get work; else full dim.
    for t in (2048, 1024, 512, 256, 128):
        if n_cols % t == 0 and n_cols // t >= 2:
            return t
    return n_cols


# --------------------------------------------------------------------------- #
# Forward wrapper (matches Interpolate.forward on NCHW input).
# --------------------------------------------------------------------------- #
@functools.partial(
    jax.jit, static_argnames=("size", "scale_factor", "mode", "align_corners"))
def interpolate_forward(x, *, size=None, scale_factor=None, mode="nearest",
                        align_corners=True):
    N, C, H, W = x.shape
    out_h, out_w = _output_hw(H, W, size, scale_factor)

    # Per-axis 1-D matrices -> Kronecker map on the flattened spatial dim.
    # (PyTorch rejects nearest+align_corners; here align_corners is simply
    #  ignored for 'nearest'.)
    a_h = _axis_interp_matrix(H, out_h, mode, align_corners)        # (out_h, H)
    a_w = _axis_interp_matrix(W, out_w, mode, align_corners)        # (out_w, W)
    kmat = np.einsum("ph,qw->hwpq", a_h, a_w).reshape(H * W, out_h * out_w)

    B, HW, OF = N * C, H * W, out_h * out_w
    x2d = x.reshape(B, HW).astype(_COMPUTE_DTYPE)     # free reshape; bf16 halves DMA
    wk = jnp.asarray(kmat, dtype=_COMPUTE_DTYPE)

    tb = _pick_row_tile(B)
    tn = _pick_col_tile(OF)
    grid = (B // tb, OF // tn)

    out2d = pl.pallas_call(
        _interp_matmul_kernel,
        out_shape=jax.ShapeDtypeStruct((B, OF), x.dtype),
        grid_spec=pltpu.PrefetchScalarGridSpec(
            num_scalar_prefetch=0,
            grid=grid,
            in_specs=[
                pl.BlockSpec((tb, HW), lambda i, j: (i, 0)),   # rows of x, lane-dense
                pl.BlockSpec((HW, tn), lambda i, j: (0, j)),   # interp-matrix columns
            ],
            out_specs=pl.BlockSpec((tb, tn), lambda i, j: (i, j)),
        ),
        compiler_params=pltpu.CompilerParams(
            dimension_semantics=("parallel", "parallel")),
    )(x2d, wk)

    return out2d.reshape(N, C, out_h, out_w)          # free reshape back to NCHW


# --------------------------------------------------------------------------- #
# Independent gather/lerp reference (mirrors F.interpolate on NCHW).
# --------------------------------------------------------------------------- #
def _reference_interpolate(x, out_h, out_w, mode, align_corners):
    N, C, H, W = x.shape
    if mode == "nearest":
        ih = np.clip(np.floor(np.arange(out_h) * (H / out_h)).astype(np.int32), 0, H - 1)
        iw = np.clip(np.floor(np.arange(out_w) * (W / out_w)).astype(np.int32), 0, W - 1)
        return x[:, :, ih, :][:, :, :, iw]

    def coords(n_in, n_out):
        if n_out == 1:
            s = np.zeros((1,)) if align_corners else np.clip(
                np.array([0.5 * n_in - 0.5]), 0.0, n_in - 1)
        elif align_corners:
            s = np.arange(n_out) * ((n_in - 1) / (n_out - 1))
        else:
            s = np.clip((np.arange(n_out) + 0.5) * (n_in / n_out) - 0.5, 0.0, n_in - 1)
        lo = np.clip(np.floor(s).astype(np.int32), 0, n_in - 1)
        hi = np.minimum(lo + 1, n_in - 1)
        f = jnp.asarray((s - lo).astype(np.float32))
        return lo, hi, f

    hlo, hhi, hf = coords(H, out_h)
    wlo, whi, wf = coords(W, out_w)
    top = (x[:, :, hlo, :] * (1.0 - hf)[None, None, :, None]
           + x[:, :, hhi, :] * hf[None, None, :, None])
    return (top[:, :, :, wlo] * (1.0 - wf)[None, None, None, :]
            + top[:, :, :, whi] * wf[None, None, None, :])


if __name__ == "__main__":
    key = jax.random.PRNGKey(0)
    x = jax.random.normal(key, (2, 4, 16, 16), dtype=jnp.float32)   # (N, C, H, W)

    # Interpolate(scale_factor=2, mode='bilinear')  — align_corners=True default
    # (the only align_corners-compatible mode in the module's constructor).
    out = interpolate_forward(x, scale_factor=2, mode="bilinear", align_corners=True)
    out = jax.block_until_ready(out)
    assert out.shape == (2, 4, 32, 32), out.shape
    ref = _reference_interpolate(x, 32, 32, "bilinear", True)
    err = float(jnp.max(jnp.abs(out - ref)))
    assert err < 5e-2, err          # bf16 MXU operands -> relaxed tolerance

    # Module's default mode='nearest' (align_corners ignored for nearest).
    out_n = interpolate_forward(x, scale_factor=2, mode="nearest", align_corners=True)
    out_n = jax.block_until_ready(out_n)
    assert out_n.shape == (2, 4, 32, 32), out_n.shape
    ref_n = _reference_interpolate(x, 32, 32, "nearest", None)
    err_n = float(jnp.max(jnp.abs(out_n - ref_n)))
    assert err_n < 5e-2, err_n

    print("KERNEL_OK")
</pallas_src>

<mosaic_0001>
module attributes {stable_mosaic.version = 11 : i64} {
  func.func @_interp_matmul_kernel(%arg0: i32, %arg1: i32, %arg2: memref<8x256xbf16, #tpu.memory_space<vmem>>, %arg3: memref<256x512xbf16, #tpu.memory_space<vmem>>, %arg4: memref<8x512xf32, #tpu.memory_space<vmem>>) attributes {dimension_semantics = [#tpu.dimension_semantics<parallel>, #tpu.dimension_semantics<parallel>], iteration_bounds = array<i64: 1, 2>, scalar_prefetch = 0 : i64, scratch_operands = 0 : i64, tpu.core_type = #tpu.core_type<tc>, window_params = [{transform_indices = @transform_0, window_bounds = array<i64: 8, 256>}, {transform_indices = @transform_1, window_bounds = array<i64: 256, 512>}, {transform_indices = @transform_2, window_bounds = array<i64: 8, 512>}]} {
    %c0 = arith.constant 0 : index
    %c0_0 = arith.constant 0 : index
    %0 = vector.load %arg2[%c0, %c0_0] : memref<8x256xbf16, #tpu.memory_space<vmem>>, vector<8x256xbf16>
    %c0_1 = arith.constant 0 : index
    %c0_2 = arith.constant 0 : index
    %1 = vector.load %arg3[%c0_1, %c0_2] : memref<256x512xbf16, #tpu.memory_space<vmem>>, vector<256x512xbf16>
    %cst = arith.constant dense<0.000000e+00> : vector<8x512xf32>
    %2 = tpu.matmul %0, %1, %cst {dimension_numbers = #tpu.dot_dimension_numbers<[1], [0], [0], [1], [0, 0, 1, 1], [], []>} : vector<8x256xbf16>, vector<256x512xbf16>, vector<8x512xf32> -> vector<8x512xf32>
    %c0_3 = arith.constant 0 : index
    %c0_4 = arith.constant 0 : index
    %3 = vector.load %arg4[%c0_3, %c0_4] : memref<8x512xf32, #tpu.memory_space<vmem>>, vector<8x512xf32>
    tpu.vector_store %arg4[%c0_3, %c0_4], %2 {strides = array<i32>} : memref<8x512xf32, #tpu.memory_space<vmem>>, vector<8x512xf32>,
    return
  }
  func.func @transform_0(%arg0: i32, %arg1: i32) -> (i32, i32) {
    %c0_i32 = arith.constant 0 : i32
    %c0_i32_0 = arith.constant 0 : i32
    return %arg0, %c0_i32 : i32, i32
  }
  func.func @transform_1(%arg0: i32, %arg1: i32) -> (i32, i32) {
    %c0_i32 = arith.constant 0 : i32
    %c0_i32_0 = arith.constant 0 : i32
    return %c0_i32, %arg1 : i32, i32
  }
  func.func @transform_2(%arg0: i32, %arg1: i32) -> (i32, i32) {
    %c0_i32 = arith.constant 0 : i32
    return %arg0, %arg1 : i32, i32
  }
}

</mosaic_0001>

<llo_original>
// kernel: interpolate_forward.1
$region0: #{interpolate_forward.1}
  #allocation0 [shape = 'u32[]', space=smem, size = 0x4, offset = 0x4, fixed_abs, tag = 'smem constant byte address 0x4 - core index']
  #allocation1 [shape = 'u32[144,128]{1,0:T(1,128)}', space=vmem, size = 0x12000, scoped, tag = 'internal scratch']
  %s0 = inlined_call_operand.vmem [shape: bf16[8,256], index: 0, kind: input, shape index: {}]
  %s1 = inlined_call_operand.vmem [shape: bf16[256,1024], index: 1, kind: input, shape index: {}]
  %s2 = inlined_call_operand.vmem [shape: f32[8,1024], index: 2, kind: output, shape index: {}]
  %s3 = sld [smem:[#allocation0]]
  $region64: #{interpolate_forward.1} parent=0
    _
  %s5 = ssub.s32 1, %s3
  %s6 = scalar_select 0, %s5, %s3
  $region1: #{interpolate_forward.1} parent=0
    #allocation2 [shape = 'u8[524288]{0}', space=vmem, size = 0x80000, scoped, tag = 'input window, operand 1']
    loop: start=0, step=1, limit=4
    $region2: #{interpolate_forward.1} parent=1 // loop_pre_header
      _
    $region3: #{interpolate_forward.1} parent=1 // loop_header
      %s8 = sphi 0, %s12
      %p9 = scmp.ge.s32.totalorder %s8, 4
      %s15 = sphi 0, %s27
      %s16 = sphi 0, %s23
      %s17 = sphi 0, %s15
      %s18 = sphi 0, %s16
      %s19 = sphi 0, %s17
      %s20 = sphi 0, %s18
      %s30 = sphi 0, %s32
      %s33 = sphi 0, %s30
      %s34 = sphi 0, %s33
      %s50 = sphi 0, %s34
      %s56 = sphi 0, %s58
      %s59 = sphi 0, %s56
      %s60 = sphi 0, %s59
      %s76 = sphi 0, %s60
      %s84 = sphi 0, %s86
      %s87 = sphi 0, %s84
      %s88 = sphi 0, %s87
      %s104 = sphi 0, %s88
    $region4: #{interpolate_forward.1} parent=1 // loop_header_branch
      %11 = sbr.rel (%p9) target = $region8
    $region5: #{interpolate_forward.1} parent=1 // loop_body
      %s13 = ssub.s32 %s8, 1
      %s14 = ssub.s32 %s8, 2
      %s21 = sadd.s32 1, %s16
      %p22 = scmp.ge.s32.totalorder %s21, 2
      %s23 = scalar_select %p22, 0, %s21
      %s24 = sadd.s32 1, %s15
      %s25 = scalar_select %p22, %s24, %s15
      %p26 = scmp.ge.s32.totalorder %s25, 1
      %s27 = scalar_select %p26, 0, %s25
      %s28 = ssub.s32 %s15, %s27
      %p29 = scmp.eq.s32.totalorder %s28, 0
      %s31 = sadd.s32 %s30, 1
      %s32 = scalar_select %p29, %s30, %s31
      %p35 = pneg %p29
      %p36 = scmp.eq.s32.totalorder %s8, 1
      %p37 = por %p35, %p36
      %p38 = scmp.ne.s32.totalorder %s30, %s33
      %p39 = scmp.eq.s32.totalorder %s8, 0
      %p40 = por %p38, %p39
      %p41 = scmp.ne.s32.totalorder %s30, %s33
      %p42 = scmp.eq.s32.totalorder %s13, 1
      %p43 = por %p41, %p42
      %p44 = scmp.ne.s32.totalorder %s33, %s34
      %p45 = scmp.eq.s32.totalorder %s13, 0
      %p46 = por %p44, %p45
      %p47 = scmp.ne.s32.totalorder %s33, %s34
      %p48 = scmp.eq.s32.totalorder %s14, 1
      %p49 = por %p47, %p48
      %p51 = scmp.ne.s32.totalorder %s34, %s50
      %p52 = scmp.eq.s32.totalorder %s14, 0
      %p53 = por %p51, %p52
      %s54 = ssub.s32 %s16, %s23
      %p55 = scmp.eq.s32.totalorder %s54, 0
      %s57 = sadd.s32 %s56, 1
      %s58 = scalar_select %p55, %s56, %s57
      %p61 = pneg %p55
      %p62 = scmp.eq.s32.totalorder %s8, 1
      %p63 = por %p61, %p62
      %p64 = scmp.ne.s32.totalorder %s56, %s59
      %p65 = scmp.eq.s32.totalorder %s8, 0
      %p66 = por %p64, %p65
      %p67 = scmp.ne.s32.totalorder %s56, %s59
      %p68 = scmp.eq.s32.totalorder %s13, 1
      %p69 = por %p67, %p68
      %p70 = scmp.ne.s32.totalorder %s59, %s60
      %p71 = scmp.eq.s32.totalorder %s13, 0
      %p72 = por %p70, %p71
      %p73 = scmp.ne.s32.totalorder %s59, %s60
      %p74 = scmp.eq.s32.totalorder %s14, 1
      %p75 = por %p73, %p74
      %p77 = scmp.ne.s32.totalorder %s60, %s76
      %p78 = scmp.eq.s32.totalorder %s14, 0
      %p79 = por %p77, %p78
      %s80 = ssub.s32 %s15, %s27
      %s81 = ssub.s32 %s16, %s23
      %s82 = sor.u32 %s80, %s81
      %p83 = scmp.eq.s32.totalorder %s82, 0
      %s85 = sadd.s32 %s84, 1
      %s86 = scalar_select %p83, %s84, %s85
      %p89 = pneg %p83
      %p90 = scmp.eq.s32.totalorder %s8, 1
      %p91 = por %p89, %p90
      %p92 = scmp.ne.s32.totalorder %s84, %s87
      %p93 = scmp.eq.s32.totalorder %s8, 0
      %p94 = por %p92, %p93
      %p95 = scmp.ne.s32.totalorder %s84, %s87
      %p96 = scmp.eq.s32.totalorder %s13, 1
      %p97 = por %p95, %p96
      %p98 = scmp.ne.s32.totalorder %s87, %s88
      %p99 = scmp.eq.s32.totalorder %s13, 0
      %p100 = por %p98, %p99
      %p101 = scmp.ne.s32.totalorder %s87, %s88
      %p102 = scmp.eq.s32.totalorder %s14, 1
      %p103 = por %p101, %p102
      %p105 = scmp.ne.s32.totalorder %s88, %s104
      %p106 = scmp.eq.s32.totalorder %s14, 0
      %p107 = por %p105, %p106
      %p108 = scmp.le.s32.totalorder 1, %s8
      %p109 = scmp.lt.s32.totalorder %s8, 3
      %p110 = pnand %p108, %p109
      %p111 = pneg %p110
      // Predicated region
      $region9: #{interpolate_forward.1} parent=5 // pred_check
        _
      $region10: #{interpolate_forward.1} parent=5 // pred_check_branch
        %113 = sbr.rel (%p110) target = $region12
      $region11: #{interpolate_forward.1} parent=5 // pred_region
        %s114 = ssub.s32 %s8, 1
        // Predicated region
        $region13: #{interpolate_forward.1} parent=11 // pred_check
          %p115 = pneg %p46
        $region14: #{interpolate_forward.1} parent=11 // pred_check_branch
          %117 = sbr.rel (%p115) target = $region16
        $region15: #{interpolate_forward.1} parent=11 // pred_region
          %p118 = scmp.lt.s32.totalorder %s17, 0
          %s119 = scalar_select %p118, %s17, 0
          %s120 = smul.addr %s119, 2
          %s121 = smul.addr %s120, 4
          %s122 = scalar_lea.vmem %s0, %s121
        $region16: #{interpolate_forward.1} parent=11 // pred_fallthru
          _
      $region12: #{interpolate_forward.1} parent=5 // pred_fallthru
        _
      %p123 = scmp.lt.s32.totalorder %s8, 2
      // Predicated region
      $region17: #{interpolate_forward.1} parent=5 // pred_check
        %p124 = pneg %p123
      $region18: #{interpolate_forward.1} parent=5 // pred_check_branch
        %126 = sbr.rel (%p124) target = $region20
      $region19: #{interpolate_forward.1} parent=5 // pred_region
        // Predicated region
        $region21: #{interpolate_forward.1} parent=19 // pred_check
          %p127 = pneg %p66
        $region22: #{interpolate_forward.1} parent=19 // pred_check_branch
          %129 = sbr.rel (%p127) target = $region24
        $region23: #{interpolate_forward.1} parent=19 // pred_region
          %s130 = sand.u32 %s56, 1
          %s131 = sand.u32 %s56, 1
          %s132 = smul.addr %s131, 512
          %s133 = scalar_lea.vmem [#allocation2], %s132
          %s134 = smul.u32 4, %s16
          %s135 = smul.addr %s134, 4
          %s136 = scalar_lea.vmem %s1, %s135
          // Predicated region
          $region25: #{interpolate_forward.1} parent=23 // pred_check
            _
          $region26: #{interpolate_forward.1} parent=23 // pred_check_branch
            %138 = sbr.rel (0) target = $region28
          $region27: #{interpolate_forward.1} parent=23 // pred_region
            // Predicated region
            $region29: #{interpolate_forward.1} parent=27 // pred_check
              _
            $region30: #{interpolate_forward.1} parent=27 // pred_check_branch
              %140 = sbr.rel (0) target = $region32
            $region31: #{interpolate_forward.1} parent=27 // pred_region
              loop: start=0, step=1, limit=1
              $region33: #{interpolate_forward.1} parent=31 // loop_pre_header
                _
              $region34: #{interpolate_forward.1} parent=31 // loop_header
                %s142 = sphi 0, %s146
                %p143 = scmp.ge.s32.totalorder %s142, 1
                %s147 = sphi %s136, %s136
                %s148 = sphi %s133, %s133
              $region35: #{interpolate_forward.1} parent=31 // loop_header_branch
                %145 = sbr.rel (%p143) target = $region39
              $region36: #{interpolate_forward.1} parent=31 // loop_body
                %v149 = vld [vmem:[%s147] sm:$0xff]
                %150 = vst [vmem:[%s148] sm:$0xff] %v149
                %v151 = vld [vmem:[%s147 + $0x8] sm:$0xff]
                %152 = vst [vmem:[%s148 + $0x8] sm:$0xff] %v151
                %v153 = vld [vmem:[%s147 + $0x20] sm:$0xff]
                %154 = vst [vmem:[%s148 + $0x10] sm:$0xff] %v153
                %v155 = vld [vmem:[%s147 + $0x28] sm:$0xff]
                %156 = vst [vmem:[%s148 + $0x18] sm:$0xff] %v155
                %v157 = vld [vmem:[%s147 + $0x40] sm:$0xff]
                %158 = vst [vmem:[%s148 + $0x20] sm:$0xff] %v157
                %v159 = vld [vmem:[%s147 + $0x48] sm:$0xff]
                %160 = vst [vmem:[%s148 + $0x28] sm:$0xff] %v159
                %v161 = vld [vmem:[%s147 + $0x60] sm:$0xff]
                %162 = vst [vmem:[%s148 + $0x30] sm:$0xff] %v161
                %v163 = vld [vmem:[%s147 + $0x68] sm:$0xff]
                %164 = vst [vmem:[%s148 + $0x38] sm:$0xff] %v163
                %v165 = vld [vmem:[%s147 + $0x80] sm:$0xff]
                %166 = vst [vmem:[%s148 + $0x40] sm:$0xff] %v165
                %v167 = vld [vmem:[%s147 + $0x88] sm:$0xff]
                %168 = vst [vmem:[%s148 + $0x48] sm:$0xff] %v167
                %v169 = vld [vmem:[%s147 + $0xa0] sm:$0xff]
                %170 = vst [vmem:[%s148 + $0x50] sm:$0xff] %v169
                %v171 = vld [vmem:[%s147 + $0xa8] sm:$0xff]
                %172 = vst [vmem:[%s148 + $0x58] sm:$0xff] %v171
                %v173 = vld [vmem:[%s147 + $0xc0] sm:$0xff]
                %174 = vst [vmem:[%s148 + $0x60] sm:$0xff] %v173
                %v175 = vld [vmem:[%s147 + $0xc8] sm:$0xff]
                %176 = vst [vmem:[%s148 + $0x68] sm:$0xff] %v175
                %v177 = vld [vmem:[%s147 + $0xe0] sm:$0xff]
                %178 = vst [vmem:[%s148 + $0x70] sm:$0xff] %v177
                %v179 = vld [vmem:[%s147 + $0xe8] sm:$0xff]
                %180 = vst [vmem:[%s148 + $0x78] sm:$0xff] %v179
                %v181 = vld [vmem:[%s147 + $0x100] sm:$0xff]
                %182 = vst [vmem:[%s148 + $0x80] sm:$0xff] %v181
                %v183 = vld [vmem:[%s147 + $0x108] sm:$0xff]
                %184 = vst [vmem:[%s148 + $0x88] sm:$0xff] %v183
                %v185 = vld [vmem:[%s147 + $0x120] sm:$0xff]
                %186 = vst [vmem:[%s148 + $0x90] sm:$0xff] %v185
                %v187 = vld [vmem:[%s147 + $0x128] sm:$0xff]
                %188 = vst [vmem:[%s148 + $0x98] sm:$0xff] %v187
                %v189 = vld [vmem:[%s147 + $0x140] sm:$0xff]
                %190 = vst [vmem:[%s148 + $0xa0] sm:$0xff] %v189
                %v191 = vld [vmem:[%s147 + $0x148] sm:$0xff]
                %192 = vst [vmem:[%s148 + $0xa8] sm:$0xff] %v191
                %v193 = vld [vmem:[%s147 + $0x160] sm:$0xff]
                %194 = vst [vmem:[%s148 + $0xb0] sm:$0xff] %v193
                %v195 = vld [vmem:[%s147 + $0x168] sm:$0xff]
                %196 = vst [vmem:[%s148 + $0xb8] sm:$0xff] %v195
                %v197 = vld [vmem:[%s147 + $0x180] sm:$0xff]
                %198 = vst [vmem:[%s148 + $0xc0] sm:$0xff] %v197
                %v199 = vld [vmem:[%s147 + $0x188] sm:$0xff]
                %200 = vst [vmem:[%s148 + $0xc8] sm:$0xff] %v199
                %v201 = vld [vmem:[%s147 + $0x1a0] sm:$0xff]
                %202 = vst [vmem:[%s148 + $0xd0] sm:$0xff] %v201
                %v203 = vld [vmem:[%s147 + $0x1a8] sm:$0xff]
                %204 = vst [vmem:[%s148 + $0xd8] sm:$0xff] %v203
                %v205 = vld [vmem:[%s147 + $0x1c0] sm:$0xff]
                %206 = vst [vmem:[%s148 + $0xe0] sm:$0xff] %v205
                %v207 = vld [vmem:[%s147 + $0x1c8] sm:$0xff]
                %208 = vst [vmem:[%s148 + $0xe8] sm:$0xff] %v207
                %v209 = vld [vmem:[%s147 + $0x1e0] sm:$0xff]
                %210 = vst [vmem:[%s148 + $0xf0] sm:$0xff] %v209
                %v211 = vld [vmem:[%s147 + $0x1e8] sm:$0xff]
                %212 = vst [vmem:[%s148 + $0xf8] sm:$0xff] %v211
                %v213 = vld [vmem:[%s147 + $0x200] sm:$0xff]
                %214 = vst [vmem:[%s148 + $0x100] sm:$0xff] %v213
                %v215 = vld [vmem:[%s147 + $0x208] sm:$0xff]
                %216 = vst [vmem:[%s148 + $0x108] sm:$0xff] %v215
                %v217 = vld [vmem:[%s147 + $0x220] sm:$0xff]
                %218 = vst [vmem:[%s148 + $0x110] sm:$0xff] %v217
                %v219 = vld [vmem:[%s147 + $0x228] sm:$0xff]
                %220 = vst [vmem:[%s148 + $0x118] sm:$0xff] %v219
                %v221 = vld [vmem:[%s147 + $0x240] sm:$0xff]
                %222 = vst [vmem:[%s148 + $0x120] sm:$0xff] %v221
                %v223 = vld [vmem:[%s147 + $0x248] sm:$0xff]
                %224 = vst [vmem:[%s148 + $0x128] sm:$0xff] %v223
                %v225 = vld [vmem:[%s147 + $0x260] sm:$0xff]
                %226 = vst [vmem:[%s148 + $0x130] sm:$0xff] %v225
                %v227 = vld [vmem:[%s147 + $0x268] sm:$0xff]
                %228 = vst [vmem:[%s148 + $0x138] sm:$0xff] %v227
                %v229 = vld [vmem:[%s147 + $0x280] sm:$0xff]
                %230 = vst [vmem:[%s148 + $0x140] sm:$0xff] %v229
                %v231 = vld [vmem:[%s147 + $0x288] sm:$0xff]
                %232 = vst [vmem:[%s148 + $0x148] sm:$0xff] %v231
                %v233 = vld [vmem:[%s147 + $0x2a0] sm:$0xff]
                %234 = vst [vmem:[%s148 + $0x150] sm:$0xff] %v233
                %v235 = vld [vmem:[%s147 + $0x2a8] sm:$0xff]
                %236 = vst [vmem:[%s148 + $0x158] sm:$0xff] %v235
                %v237 = vld [vmem:[%s147 + $0x2c0] sm:$0xff]
                %238 = vst [vmem:[%s148 + $0x160] sm:$0xff] %v237
                %v239 = vld [vmem:[%s147 + $0x2c8] sm:$0xff]
                %240 = vst [vmem:[%s148 + $0x168] sm:$0xff] %v239
                %v241 = vld [vmem:[%s147 + $0x2e0] sm:$0xff]
                %242 = vst [vmem:[%s148 + $0x170] sm:$0xff] %v241
                %v243 = vld [vmem:[%s147 + $0x2e8] sm:$0xff]
                %244 = vst [vmem:[%s148 + $0x178] sm:$0xff] %v243
                %v245 = vld [vmem:[%s147 + $0x300] sm:$0xff]
                %246 = vst [vmem:[%s148 + $0x180] sm:$0xff] %v245
                %v247 = vld [vmem:[%s147 + $0x308] sm:$0xff]
                %248 = vst [vmem:[%s148 + $0x188] sm:$0xff] %v247
                %v249 = vld [vmem:[%s147 + $0x320] sm:$0xff]
                %250 = vst [vmem:[%s148 + $0x190] sm:$0xff] %v249
                %v251 = vld [vmem:[%s147 + $0x328] sm:$0xff]
                %252 = vst [vmem:[%s148 + $0x198] sm:$0xff] %v251
                %v253 = vld [vmem:[%s147 + $0x340] sm:$0xff]
                %254 = vst [vmem:[%s148 + $0x1a0] sm:$0xff] %v253
                %v255 = vld [vmem:[%s147 + $0x348] sm:$0xff]
                %256 = vst [vmem:[%s148 + $0x1a8] sm:$0xff] %v255
                %v257 = vld [vmem:[%s147 + $0x360] sm:$0xff]
                %258 = vst [vmem:[%s148 + $0x1b0] sm:$0xff] %v257
                %v259 = vld [vmem:[%s147 + $0x368] sm:$0xff]
                %260 = vst [vmem:[%s148 + $0x1b8] sm:$0xff] %v259
                %v261 = vld [vmem:[%s147 + $0x380] sm:$0xff]
                %262 = vst [vmem:[%s148 + $0x1c0] sm:$0xff] %v261
                %v263 = vld [vmem:[%s147 + $0x388] sm:$0xff]
                %264 = vst [vmem:[%s148 + $0x1c8] sm:$0xff] %v263
                %v265 = vld [vmem:[%s147 + $0x3a0] sm:$0xff]
                %266 = vst [vmem:[%s148 + $0x1d0] sm:$0xff] %v265
                %v267 = vld [vmem:[%s147 + $0x3a8] sm:$0xff]
                %268 = vst [vmem:[%s148 + $0x1d8] sm:$0xff] %v267
                %v269 = vld [vmem:[%s147 + $0x3c0] sm:$0xff]
                %270 = vst [vmem:[%s148 + $0x1e0] sm:$0xff] %v269
                %v271 = vld [vmem:[%s147 + $0x3c8] sm:$0xff]
                %272 = vst [vmem:[%s148 + $0x1e8] sm:$0xff] %v271
                %v273 = vld [vmem:[%s147 + $0x3e0] sm:$0xff]
                %274 = vst [vmem:[%s148 + $0x1f0] sm:$0xff] %v273
                %v275 = vld [vmem:[%s147 + $0x3e8] sm:$0xff]
                %276 = vst [vmem:[%s148 + $0x1f8] sm:$0xff] %v275
              $region37: #{interpolate_forward.1} parent=31 // loop_footer
                %s146 = sadd.s32 1, %s142
              $region38: #{interpolate_forward.1} parent=31 // loop_footer_branch
                %141 = sbr.rel target = $region34
              $region39: #{interpolate_forward.1} parent=31 // loop_exit
                _
            $region32: #{interpolate_forward.1} parent=27 // pred_fallthru
              _
            // Predicated region
            $region40: #{interpolate_forward.1} parent=27 // pred_check
              _
            $region41: #{interpolate_forward.1} parent=27 // pred_check_branch
              %278 = sbr.rel target = $region43
            $region42: #{interpolate_forward.1} parent=27 // pred_region
              _
            $region43: #{interpolate_forward.1} parent=27 // pred_fallthru
              _
          $region28: #{interpolate_forward.1} parent=23 // pred_fallthru
            _
          %279 = vnop
        $region24: #{interpolate_forward.1} parent=19 // pred_fallthru
          _
      $region20: #{interpolate_forward.1} parent=5 // pred_fallthru
        _
      %p280 = scmp.le.s32.totalorder 1, %s8
      %p281 = scmp.lt.s32.totalorder %s8, 3
      %p282 = pnand %p280, %p281
      %p283 = pneg %p282
      // Predicated region
      $region44: #{interpolate_forward.1} parent=5 // pred_check
        _
      $region45: #{interpolate_forward.1} parent=5 // pred_check_branch
        %285 = sbr.rel (%p282) target = $region47
      $region46: #{interpolate_forward.1} parent=5 // pred_region
        %s286 = ssub.s32 %s8, 1
        %s287 = sand.u32 %s59, 1
        %s288 = sand.u32 %s59, 1
        %s289 = smul.addr %s288, 512
        %s290 = scalar_lea.vmem [#allocation2], %s289
        // Predicated region
        $region48: #{interpolate_forward.1} parent=46 // pred_check
          %p291 = pneg %p72
        $region49: #{interpolate_forward.1} parent=46 // pred_check_branch
          %293 = sbr.rel (%p291) target = $region51
        $region50: #{interpolate_forward.1} parent=46 // pred_region
          _
        $region51: #{interpolate_forward.1} parent=46 // pred_fallthru
          _
        %p294 = scmp.lt.s32.totalorder %s17, 0
        %s295 = scalar_select %p294, %s17, 0
        %s296 = smul.addr %s295, 2
        %s297 = smul.addr %s296, 4
        %s298 = scalar_lea.vmem %s0, %s297
        %p299 = pneg %p46
        %p300 = pneg %p43
        %s301 = sand.u32 %s59, 1
        %s302 = sand.u32 %s59, 1
        %s303 = smul.addr %s302, 512
        %s304 = scalar_lea.vmem [#allocation2], %s303
        %p305 = pneg %p72
        %p306 = pneg %p69
        %p307 = pneg %p100
        %p308 = pneg %p97
        %s309 = smul.u32 4, %s18
        %p310 = scmp.lt.s32.totalorder %s17, 0
        %s311 = scalar_select %p310, %s17, 0
        %p312 = scmp.lt.s32.totalorder %s309, 7
        %s313 = scalar_select %p312, %s309, 7
        %s314 = smul.addr %s311, 8
        %s315 = sadd.s32 %s313, %s314
        %s316 = smul.addr %s315, 8
        %s317 = scalar_lea.vmem %s2, %s316
        %p318 = scmp.lt.s32.totalorder %s17, 0
        %s319 = scalar_select %p318, %s17, 0
        %s320 = smul.addr %s319, 2
        %s321 = smul.addr %s320, 4
        %s322 = scalar_lea.vmem %s0, %s321
        %s323 = smul.u32 4, %s18
        %s324 = smul.u32 4, %s18
        %p325 = scmp.lt.s32.totalorder %s17, 0
        %s326 = scalar_select %p325, %s17, 0
        %p327 = scmp.lt.s32.totalorder %s324, 7
        %s328 = scalar_select %p327, %s324, 7
        %s329 = smul.addr %s326, 8
        %s330 = sadd.s32 %s328, %s329
        %s331 = smul.addr %s330, 8
        %s332 = scalar_lea.vmem %s2, %s331
        %s333 = smul.u32 4, %s18
        %v334 = vld [vmem:[%s322] sm:$0xff]
        %v335 = vld [vmem:[%s290] sm:$0xff]
        %v336 = vld [vmem:[%s290 + $0x8] sm:$0xff]
        %v337 = vld [vmem:[%s290 + $0x10] sm:$0xff]
        %v338 = vld [vmem:[%s290 + $0x18] sm:$0xff]
        %v339 = vld [vmem:[%s290 + $0x20] sm:$0xff]
        %v340 = vld [vmem:[%s290 + $0x28] sm:$0xff]
        %v341 = vld [vmem:[%s290 + $0x30] sm:$0xff]
        %v342 = vld [vmem:[%s290 + $0x38] sm:$0xff]
        %v343 = vld [vmem:[%s290 + $0x40] sm:$0xff]
        %v344 = vld [vmem:[%s290 + $0x48] sm:$0xff]
        %v345 = vld [vmem:[%s290 + $0x50] sm:$0xff]
        %v346 = vld [vmem:[%s290 + $0x58] sm:$0xff]
        %v347 = vld [vmem:[%s290 + $0x60] sm:$0xff]
        %v348 = vld [vmem:[%s290 + $0x68] sm:$0xff]
        %v349 = vld [vmem:[%s290 + $0x70] sm:$0xff]
        %v350 = vld [vmem:[%s290 + $0x78] sm:$0xff]
        %v351 = vld [vmem:[%s290 + $0x80] sm:$0xff]
        %v352 = vld [vmem:[%s290 + $0x88] sm:$0xff]
        %v353 = vld [vmem:[%s290 + $0x90] sm:$0xff]
        %v354 = vld [vmem:[%s290 + $0x98] sm:$0xff]
        %v355 = vld [vmem:[%s290 + $0xa0] sm:$0xff]
        %v356 = vld [vmem:[%s290 + $0xa8] sm:$0xff]
        %v357 = vld [vmem:[%s290 + $0xb0] sm:$0xff]
        %v358 = vld [vmem:[%s290 + $0xb8] sm:$0xff]
        %v359 = vld [vmem:[%s290 + $0xc0] sm:$0xff]
        %v360 = vld [vmem:[%s290 + $0xc8] sm:$0xff]
        %v361 = vld [vmem:[%s290 + $0xd0] sm:$0xff]
        %v362 = vld [vmem:[%s290 + $0xd8] sm:$0xff]
        %v363 = vld [vmem:[%s290 + $0xe0] sm:$0xff]
        %v364 = vld [vmem:[%s290 + $0xe8] sm:$0xff]
        %v365 = vld [vmem:[%s290 + $0xf0] sm:$0xff]
        %v366 = vld [vmem:[%s290 + $0xf8] sm:$0xff]
        %v367 = vld [vmem:[%s290 + $0x100] sm:$0xff]
        %v368 = vld [vmem:[%s290 + $0x108] sm:$0xff]
        %v369 = vld [vmem:[%s290 + $0x110] sm:$0xff]
        %v370 = vld [vmem:[%s290 + $0x118] sm:$0xff]
        %v371 = vld [vmem:[%s290 + $0x120] sm:$0xff]
        %v372 = vld [vmem:[%s290 + $0x128] sm:$0xff]
        %v373 = vld [vmem:[%s290 + $0x130] sm:$0xff]
        %v374 = vld [vmem:[%s290 + $0x138] sm:$0xff]
        %v375 = vld [vmem:[%s290 + $0x140] sm:$0xff]
        %v376 = vld [vmem:[%s290 + $0x148] sm:$0xff]
        %v377 = vld [vmem:[%s290 + $0x150] sm:$0xff]
        %v378 = vld [vmem:[%s290 + $0x158] sm:$0xff]
        %v379 = vld [vmem:[%s290 + $0x160] sm:$0xff]
        %v380 = vld [vmem:[%s290 + $0x168] sm:$0xff]
        %v381 = vld [vmem:[%s290 + $0x170] sm:$0xff]
        %v382 = vld [vmem:[%s290 + $0x178] sm:$0xff]
        %v383 = vld [vmem:[%s290 + $0x180] sm:$0xff]
        %v384 = vld [vmem:[%s290 + $0x188] sm:$0xff]
        %v385 = vld [vmem:[%s290 + $0x190] sm:$0xff]
        %v386 = vld [vmem:[%s290 + $0x198] sm:$0xff]
        %v387 = vld [vmem:[%s290 + $0x1a0] sm:$0xff]
        %v388 = vld [vmem:[%s290 + $0x1a8] sm:$0xff]
        %v389 = vld [vmem:[%s290 + $0x1b0] sm:$0xff]
        %v390 = vld [vmem:[%s290 + $0x1b8] sm:$0xff]
        %v391 = vld [vmem:[%s290 + $0x1c0] sm:$0xff]
        %v392 = vld [vmem:[%s290 + $0x1c8] sm:$0xff]
        %v393 = vld [vmem:[%s290 + $0x1d0] sm:$0xff]
        %v394 = vld [vmem:[%s290 + $0x1d8] sm:$0xff]
        %v395 = vld [vmem:[%s290 + $0x1e0] sm:$0xff]
        %v396 = vld [vmem:[%s290 + $0x1e8] sm:$0xff]
        %v397 = vld [vmem:[%s290 + $0x1f0] sm:$0xff]
        %v398 = vld [vmem:[%s290 + $0x1f8] sm:$0xff]
        %v400 = vunpack.c.l.b16 %v334
        %v401 = vunpack.c.h.b16 %v334
        %v402 = vpack.c.b16 %v400, %v400
        %v403 = vpack.c.b16 %v401, %v401
        %v470 = vunpack.c.l.b16 %v335
        %v471 = vunpack.c.h.b16 %v335
        %v472 = vunpack.c.l.b16 %v336
        %v473 = vunpack.c.h.b16 %v336
        %v474 = vunpack.c.l.b16 %v337
        %v475 = vunpack.c.h.b16 %v337
        %v476 = vunpack.c.l.b16 %v338
        %v477 = vunpack.c.h.b16 %v338
        %v478 = vunpack.c.l.b16 %v339
        %v479 = vunpack.c.h.b16 %v339
        %v480 = vunpack.c.l.b16 %v340
        %v481 = vunpack.c.h.b16 %v340
        %v482 = vunpack.c.l.b16 %v341
        %v483 = vunpack.c.h.b16 %v341
        %v484 = vunpack.c.l.b16 %v342
        %v485 = vunpack.c.h.b16 %v342
        %v486 = vunpack.c.l.b16 %v343
        %v487 = vunpack.c.h.b16 %v343
        %v488 = vunpack.c.l.b16 %v344
        %v489 = vunpack.c.h.b16 %v344
        %v490 = vunpack.c.l.b16 %v345
        %v491 = vunpack.c.h.b16 %v345
        %v492 = vunpack.c.l.b16 %v346
        %v493 = vunpack.c.h.b16 %v346
        %v494 = vunpack.c.l.b16 %v347
        %v495 = vunpack.c.h.b16 %v347
        %v496 = vunpack.c.l.b16 %v348
        %v497 = vunpack.c.h.b16 %v348
        %v498 = vunpack.c.l.b16 %v349
        %v499 = vunpack.c.h.b16 %v349
        %v500 = vunpack.c.l.b16 %v350
        %v501 = vunpack.c.h.b16 %v350
        %v502 = vunpack.c.l.b16 %v351
        %v503 = vunpack.c.h.b16 %v351
        %v504 = vunpack.c.l.b16 %v352
        %v505 = vunpack.c.h.b16 %v352
        %v506 = vunpack.c.l.b16 %v353
        %v507 = vunpack.c.h.b16 %v353
        %v508 = vunpack.c.l.b16 %v354
        %v509 = vunpack.c.h.b16 %v354
        %v510 = vunpack.c.l.b16 %v355
        %v511 = vunpack.c.h.b16 %v355
        %v512 = vunpack.c.l.b16 %v356
        %v513 = vunpack.c.h.b16 %v356
        %v514 = vunpack.c.l.b16 %v357
        %v515 = vunpack.c.h.b16 %v357
        %v516 = vunpack.c.l.b16 %v358
        %v517 = vunpack.c.h.b16 %v358
        %v518 = vunpack.c.l.b16 %v359
        %v519 = vunpack.c.h.b16 %v359
        %v520 = vunpack.c.l.b16 %v360
        %v521 = vunpack.c.h.b16 %v360
        %v522 = vunpack.c.l.b16 %v361
        %v523 = vunpack.c.h.b16 %v361
        %v524 = vunpack.c.l.b16 %v362
        %v525 = vunpack.c.h.b16 %v362
        %v526 = vunpack.c.l.b16 %v363
        %v527 = vunpack.c.h.b16 %v363
        %v528 = vunpack.c.l.b16 %v364
        %v529 = vunpack.c.h.b16 %v364
        %v530 = vunpack.c.l.b16 %v365
        %v531 = vunpack.c.h.b16 %v365
        %v532 = vunpack.c.l.b16 %v366
        %v533 = vunpack.c.h.b16 %v366
        %v534 = vunpack.c.l.b16 %v367
        %v535 = vunpack.c.h.b16 %v367
        %v536 = vunpack.c.l.b16 %v368
        %v537 = vunpack.c.h.b16 %v368
        %v538 = vunpack.c.l.b16 %v369
        %v539 = vunpack.c.h.b16 %v369
        %v540 = vunpack.c.l.b16 %v370
        %v541 = vunpack.c.h.b16 %v370
        %v542 = vunpack.c.l.b16 %v371
        %v543 = vunpack.c.h.b16 %v371
        %v544 = vunpack.c.l.b16 %v372
        %v545 = vunpack.c.h.b16 %v372
        %v546 = vunpack.c.l.b16 %v373
        %v547 = vunpack.c.h.b16 %v373
        %v548 = vunpack.c.l.b16 %v374
        %v549 = vunpack.c.h.b16 %v374
        %v550 = vunpack.c.l.b16 %v375
        %v551 = vunpack.c.h.b16 %v375
        %v552 = vunpack.c.l.b16 %v376
        %v553 = vunpack.c.h.b16 %v376
        %v554 = vunpack.c.l.b16 %v377
        %v555 = vunpack.c.h.b16 %v377
        %v556 = vunpack.c.l.b16 %v378
        %v557 = vunpack.c.h.b16 %v378
        %v558 = vunpack.c.l.b16 %v379
        %v559 = vunpack.c.h.b16 %v379
        %v560 = vunpack.c.l.b16 %v380
        %v561 = vunpack.c.h.b16 %v380
        %v562 = vunpack.c.l.b16 %v381
        %v563 = vunpack.c.h.b16 %v381
        %v564 = vunpack.c.l.b16 %v382
        %v565 = vunpack.c.h.b16 %v382
        %v566 = vunpack.c.l.b16 %v383
        %v567 = vunpack.c.h.b16 %v383
        %v568 = vunpack.c.l.b16 %v384
        %v569 = vunpack.c.h.b16 %v384
        %v570 = vunpack.c.l.b16 %v385
        %v571 = vunpack.c.h.b16 %v385
        %v572 = vunpack.c.l.b16 %v386
        %v573 = vunpack.c.h.b16 %v386
        %v574 = vunpack.c.l.b16 %v387
        %v575 = vunpack.c.h.b16 %v387
        %v576 = vunpack.c.l.b16 %v388
        %v577 = vunpack.c.h.b16 %v388
        %v578 = vunpack.c.l.b16 %v389
        %v579 = vunpack.c.h.b16 %v389
        %v580 = vunpack.c.l.b16 %v390
        %v581 = vunpack.c.h.b16 %v390
        %v582 = vunpack.c.l.b16 %v391
        %v583 = vunpack.c.h.b16 %v391
        %v584 = vunpack.c.l.b16 %v392
        %v585 = vunpack.c.h.b16 %v392
        %v586 = vunpack.c.l.b16 %v393
        %v587 = vunpack.c.h.b16 %v393
        %v588 = vunpack.c.l.b16 %v394
        %v589 = vunpack.c.h.b16 %v394
        %v590 = vunpack.c.l.b16 %v395
        %v591 = vunpack.c.h.b16 %v395
        %v592 = vunpack.c.l.b16 %v396
        %v593 = vunpack.c.h.b16 %v396
        %v594 = vunpack.c.l.b16 %v397
        %v595 = vunpack.c.h.b16 %v397
        %v596 = vunpack.c.l.b16 %v398
        %v597 = vunpack.c.h.b16 %v398
        %v598 = vpack.c.b16 %v474, %v470
        %v599 = vpack.c.b16 %v475, %v471
        %v600 = vpack.c.b16 %v476, %v472
        %v601 = vpack.c.b16 %v477, %v473
        %v602 = vpack.c.b16 %v482, %v478
        %v603 = vpack.c.b16 %v483, %v479
        %v604 = vpack.c.b16 %v484, %v480
        %v605 = vpack.c.b16 %v485, %v481
        %v606 = vpack.c.b16 %v490, %v486
        %v607 = vpack.c.b16 %v491, %v487
        %v608 = vpack.c.b16 %v492, %v488
        %v609 = vpack.c.b16 %v493, %v489
        %v610 = vpack.c.b16 %v498, %v494
        %v611 = vpack.c.b16 %v499, %v495
        %v612 = vpack.c.b16 %v500, %v496
        %v613 = vpack.c.b16 %v501, %v497
        %v614 = vpack.c.b16 %v506, %v502
        %v615 = vpack.c.b16 %v507, %v503
        %v616 = vpack.c.b16 %v508, %v504
        %v617 = vpack.c.b16 %v509, %v505
        %v618 = vpack.c.b16 %v514, %v510
        %v619 = vpack.c.b16 %v515, %v511
        %v620 = vpack.c.b16 %v516, %v512
        %v621 = vpack.c.b16 %v517, %v513
        %v622 = vpack.c.b16 %v522, %v518
        %v623 = vpack.c.b16 %v523, %v519
        %v624 = vpack.c.b16 %v524, %v520
        %v625 = vpack.c.b16 %v525, %v521
        %v626 = vpack.c.b16 %v530, %v526
        %v627 = vpack.c.b16 %v531, %v527
        %v628 = vpack.c.b16 %v532, %v528
        %v629 = vpack.c.b16 %v533, %v529
        %v630 = vpack.c.b16 %v538, %v534
        %v631 = vpack.c.b16 %v539, %v535
        %v632 = vpack.c.b16 %v540, %v536
        %v633 = vpack.c.b16 %v541, %v537
        %v634 = vpack.c.b16 %v546, %v542
        %v635 = vpack.c.b16 %v547, %v543
        %v636 = vpack.c.b16 %v548, %v544
        %v637 = vpack.c.b16 %v549, %v545
        %v638 = vpack.c.b16 %v554, %v550
        %v639 = vpack.c.b16 %v555, %v551
        %v640 = vpack.c.b16 %v556, %v552
        %v641 = vpack.c.b16 %v557, %v553
        %v642 = vpack.c.b16 %v562, %v558
        %v643 = vpack.c.b16 %v563, %v559
        %v644 = vpack.c.b16 %v564, %v560
        %v645 = vpack.c.b16 %v565, %v561
        %v646 = vpack.c.b16 %v570, %v566
        %v647 = vpack.c.b16 %v571, %v567
        %v648 = vpack.c.b16 %v572, %v568
        %v649 = vpack.c.b16 %v573, %v569
        %v650 = vpack.c.b16 %v578, %v574
        %v651 = vpack.c.b16 %v579, %v575
        %v652 = vpack.c.b16 %v580, %v576
        %v653 = vpack.c.b16 %v581, %v577
        %v654 = vpack.c.b16 %v586, %v582
        %v655 = vpack.c.b16 %v587, %v583
        %v656 = vpack.c.b16 %v588, %v584
        %v657 = vpack.c.b16 %v589, %v585
        %v658 = vpack.c.b16 %v594, %v590
        %v659 = vpack.c.b16 %v595, %v591
        %v660 = vpack.c.b16 %v596, %v592
        %v661 = vpack.c.b16 %v597, %v593
        %726 = vmatprep.subr.bf16.mxu0 %v599
        %727 = vmatpush1.bf16.msra.mxu0 %v598
        %728 = vmatprep.subr.bf16.mxu0 %v603
        %729 = vmatpush1.bf16.msra.mxu0 %v602
        %730 = vmatprep.subr.bf16.mxu0 %v607
        %731 = vmatpush1.bf16.msra.mxu0 %v606
        %732 = vmatprep.subr.bf16.mxu0 %v611
        %733 = vmatpush1.bf16.msra.mxu0 %v610
        %734 = vmatprep.subr.bf16.mxu0 %v615
        %735 = vmatpush1.bf16.msra.mxu0 %v614
        %736 = vmatprep.subr.bf16.mxu0 %v619
        %737 = vmatpush1.bf16.msra.mxu0 %v618
        %738 = vmatprep.subr.bf16.mxu0 %v623
        %739 = vmatpush1.bf16.msra.mxu0 %v622
        %740 = vmatprep.subr.bf16.mxu0 %v627
        %741 = vmatpush1.bf16.msra.mxu0 %v626
        %742 = vmatprep.subr.bf16.mxu0 %v631
        %743 = vmatpush1.bf16.msra.mxu0 %v630
        %744 = vmatprep.subr.bf16.mxu0 %v635
        %745 = vmatpush1.bf16.msra.mxu0 %v634
        %746 = vmatprep.subr.bf16.mxu0 %v639
        %747 = vmatpush1.bf16.msra.mxu0 %v638
        %748 = vmatprep.subr.bf16.mxu0 %v643
        %749 = vmatpush1.bf16.msra.mxu0 %v642
        %750 = vmatprep.subr.bf16.mxu0 %v647
        %751 = vmatpush1.bf16.msra.mxu0 %v646
        %752 = vmatprep.subr.bf16.mxu0 %v651
        %753 = vmatpush1.bf16.msra.mxu0 %v650
        %754 = vmatprep.subr.bf16.mxu0 %v655
        %755 = vmatpush1.bf16.msra.mxu0 %v654
        %756 = vmatprep.subr.bf16.mxu0 %v659
        %757 = vmatpush1.bf16.msra.mxu0 %v658
        %758 = vmatprep.mubr.bf16.mxu0 %v403
        %759 = vmatmul.mubr.bf16.gmra.mrb[0].mxu0 %v402
        %v760 = vpop.f32.mrb[0].mxu0
        %v761 = vadd.f32 0.0, %v760
        %v762 = vpop.f32.mrb[0].mxu0
        %v763 = vadd.f32 0.0, %v762
        %v764 = vpop.f32.mrb[0].mxu0
        %v765 = vpop.f32.mrb[0].mxu0
        %766 = vdwg.mxu0
        %767 = vmatprep.subr.bf16.mxu0 %v601
        %768 = vmatpush1.bf16.msra.mxu0 %v600
        %769 = vmatprep.subr.bf16.mxu0 %v605
        %770 = vmatpush1.bf16.msra.mxu0 %v604
        %771 = vmatprep.subr.bf16.mxu0 %v609
        %772 = vmatpush1.bf16.msra.mxu0 %v608
        %773 = vmatprep.subr.bf16.mxu0 %v613
        %774 = vmatpush1.bf16.msra.mxu0 %v612
        %775 = vmatprep.subr.bf16.mxu0 %v617
        %776 = vmatpush1.bf16.msra.mxu0 %v616
        %777 = vmatprep.subr.bf16.mxu0 %v621
        %778 = vmatpush1.bf16.msra.mxu0 %v620
        %779 = vmatprep.subr.bf16.mxu0 %v625
        %780 = vmatpush1.bf16.msra.mxu0 %v624
        %781 = vmatprep.subr.bf16.mxu0 %v629
        %782 = vmatpush1.bf16.msra.mxu0 %v628
        %783 = vmatprep.subr.bf16.mxu0 %v633
        %784 = vmatpush1.bf16.msra.mxu0 %v632
        %785 = vmatprep.subr.bf16.mxu0 %v637
        %786 = vmatpush1.bf16.msra.mxu0 %v636
        %787 = vmatprep.subr.bf16.mxu0 %v641
        %788 = vmatpush1.bf16.msra.mxu0 %v640
        %789 = vmatprep.subr.bf16.mxu0 %v645
        %790 = vmatpush1.bf16.msra.mxu0 %v644
        %791 = vmatprep.subr.bf16.mxu0 %v649
        %792 = vmatpush1.bf16.msra.mxu0 %v648
        %793 = vmatprep.subr.bf16.mxu0 %v653
        %794 = vmatpush1.bf16.msra.mxu0 %v652
        %795 = vmatprep.subr.bf16.mxu0 %v657
        %796 = vmatpush1.bf16.msra.mxu0 %v656
        %797 = vmatprep.subr.bf16.mxu0 %v661
        %798 = vmatpush1.bf16.msra.mxu0 %v660
        %799 = vmatprep.mubr.bf16.mxu0 %v403
        %800 = vmatmul.mubr.bf16.gmra.mrb[0].mxu0 %v402
        %v801 = vpop.f32.mrb[0].mxu0
        %v802 = vadd.f32 0.0, %v801
        %v803 = vpop.f32.mrb[0].mxu0
        %v804 = vadd.f32 0.0, %v803
        %v805 = vpop.f32.mrb[0].mxu0
        %v806 = vpop.f32.mrb[0].mxu0
        %807 = vdwg.mxu0
        %808 = vst [vmem:[%s332] sm:$0xff] %v761
        %809 = vst [vmem:[%s332 + $0x8] sm:$0xff] %v763
        %810 = vst [vmem:[%s332 + $0x10] sm:$0xff] %v802
        %811 = vst [vmem:[%s332 + $0x18] sm:$0xff] %v804
        %s812 = smul.u32 4, %s18
        %p813 = scmp.lt.s32.totalorder %s17, 0
        %s814 = scalar_select %p813, %s17, 0
        %p815 = scmp.lt.s32.totalorder %s812, 7
        %s816 = scalar_select %p815, %s812, 7
        %s817 = smul.addr %s814, 8
        %s818 = sadd.s32 %s816, %s817
        %s819 = smul.addr %s818, 8
        %s820 = scalar_lea.vmem %s2, %s819
        // Predicated region
        $region52: #{interpolate_forward.1} parent=46 // pred_check
          %p821 = pneg %p97
        $region53: #{interpolate_forward.1} parent=46 // pred_check_branch
          %823 = sbr.rel (%p821) target = $region55
        $region54: #{interpolate_forward.1} parent=46 // pred_region
          %s824 = smul.u32 4, %s18
        $region55: #{interpolate_forward.1} parent=46 // pred_fallthru
          _
      $region47: #{interpolate_forward.1} parent=5 // pred_fallthru
        _
      %p825 = scmp.le.s32.totalorder 2, %s8
      // Predicated region
      $region56: #{interpolate_forward.1} parent=5 // pred_check
        %p826 = pneg %p825
      $region57: #{interpolate_forward.1} parent=5 // pred_check_branch
        %828 = sbr.rel (%p826) target = $region59
      $region58: #{interpolate_forward.1} parent=5 // pred_region
        %s829 = ssub.s32 %s8, 2
        // Predicated region
        $region60: #{interpolate_forward.1} parent=58 // pred_check
          %p830 = pneg %p103
        $region61: #{interpolate_forward.1} parent=58 // pred_check_branch
          %832 = sbr.rel (%p830) target = $region63
        $region62: #{interpolate_forward.1} parent=58 // pred_region
          %s833 = smul.u32 4, %s20
          %p834 = scmp.lt.s32.totalorder %s19, 0
          %s835 = scalar_select %p834, %s19, 0
          %p836 = scmp.lt.s32.totalorder %s833, 7
          %s837 = scalar_select %p836, %s833, 7
          %s838 = smul.addr %s835, 8
          %s839 = sadd.s32 %s837, %s838
          %s840 = smul.addr %s839, 8
          %s841 = scalar_lea.vmem %s2, %s840
        $region63: #{interpolate_forward.1} parent=58 // pred_fallthru
          _
      $region59: #{interpolate_forward.1} parent=5 // pred_fallthru
        _
    $region6: #{interpolate_forward.1} parent=1 // loop_footer
      %s12 = sadd.s32 1, %s8
    $region7: #{interpolate_forward.1} parent=1 // loop_footer_branch
      %7 = sbr.rel target = $region3
    $region8: #{interpolate_forward.1} parent=1 // loop_exit
      _

</llo_original>
